<compile_context>
chip_gen: v7x
topology: tpu7x:2x2x1
jax: 0.10.0
libtpu: 0.0.40
codegen_flags: <defaults>
</compile_context>

<pallas_src>
import jax
import jax.numpy as jnp
import numpy as np
from jax.experimental import pallas as pl
from jax.experimental.pallas import tpu as pltpu

CLS, COLON, PAD, PASSAGE, QUERY = 101, 1024, 0, 6019, 23032


# ----------------------------- Pallas kernel ------------------------------- #
def _hbm_copy_kernel(in_ref, out_ref, sem):
    # Single HBM->HBM DMA of the whole tensor (no VMEM bounce, no grid).
    cp = pltpu.make_async_copy(in_ref, out_ref, sem)
    cp.start()
    cp.wait()


def _materialize_copy(x):
    """Materialize a fresh HBM buffer equal to `x` with one DMA."""
    return pl.pallas_call(
        _hbm_copy_kernel,
        out_shape=jax.ShapeDtypeStruct(x.shape, x.dtype),
        in_specs=[pl.BlockSpec(memory_space=pl.ANY)],
        out_specs=pl.BlockSpec(memory_space=pl.ANY),
        scratch_shapes=[pltpu.SemaphoreType.DMA(())],
    )(x)


def forward_pallas(embeddings, mask=None, *, materialize_copy=False):
    """embeddings: (B, S, E) f32, mask: (B, S) f32 (unused: cancels out in the
    forward value path).

    Returns (B, S, E) f32 equal to the PyTorch forward's inputs_embeds.

    By default this is a zero-cost identity (the recommended path).  Set
    materialize_copy=True to force a distinct output buffer via a single
    HBM->HBM DMA Pallas kernel.
    """
    del mask  # m*e + (1-m)*e == e; mask only matters for gradients, not values.
    if materialize_copy:
        return _materialize_copy(embeddings)
    return embeddings


# -------------------- deterministic "module" construction ------------------ #
def build_trainable_embed_sequence(key, B, S, E, lengths):
    """Replays TrainableEmbedSequence.__init__ deterministically (no checkpoint).

    Only the 4 special word-embedding rows (CLS/QUERY/COLON/PAD) are needed by
    the init logic, so we synthesize just those instead of a 30522-row table.
    """
    k_rows, k_noise = jax.random.split(key)
    special = jax.random.normal(k_rows, (4, E), jnp.float32) * 0.1192
    cls_e, query_e, colon_e, pad_e = special[0], special[1], special[2], special[3]

    lengths = jnp.array(lengths, jnp.int32)
    ref_attention_mask = (jnp.arange(S)[None, :] < lengths[:, None]).astype(jnp.float32)

    # emb = zeros * mask -> zeros; then the three fixed prefix rows.
    emb = jnp.zeros((B, S, E), jnp.float32)
    emb = emb.at[:, 0, :].set(cls_e)
    emb = emb.at[:, 1, :].set(query_e)
    emb = emb.at[:, 2, :].set(colon_e)

    mask = ref_attention_mask
    mask = mask.at[:, 0:3].set(0.0)
    for idx, length in enumerate([int(l) for l in np.asarray(lengths)]):
        mask = mask.at[idx, length - 1:].set(0.0)
        # reproduces the torch code's whole-batch assignment emb[:, length-1:, :] = PAD
        emb = emb.at[:, length - 1:, :].set(pad_e)

    # Deterministic perturbation of the *trainable* positions only (simulates a
    # trained nn.Parameter; keeps all module invariants on the frozen positions).
    noise = jax.random.normal(k_noise, (B, S, E), jnp.float32) * 0.1192
    emb = emb + mask[:, :, None] * noise

    # TODO(synk): torch uses int64 token_type_ids; JAX x64 is off so int32 is used.
    token_type_ids = jnp.zeros((B, S), jnp.int32)
    return emb, mask, ref_attention_mask, token_type_ids


def module_forward(embeddings, mask, token_type_ids, attention_mask,
                   *, materialize_copy=False):
    inputs_embeds = forward_pallas(embeddings, mask, materialize_copy=materialize_copy)
    return inputs_embeds, token_type_ids, attention_mask


# ----------------------------------- main ----------------------------------- #
if __name__ == "__main__":
    B, S, E = 2, 8, 384          # S <= 512, E == 384 per module asserts
    lengths = [8, 6]
    key = jax.random.PRNGKey(0)

    emb, mask, attn_mask, ttids = build_trainable_embed_sequence(key, B, S, E, lengths)

    # Pure-JAX reference of the forward math (computed before the kernel call).
    ref = mask[:, :, None] * emb + (1.0 - mask)[:, :, None] * emb

    # Run the Pallas kernel path once (materialized copy) to exercise pallas_call.
    inputs_embeds, token_type_ids, attention_mask = module_forward(
        emb, mask, ttids, attn_mask, materialize_copy=True)
    jax.block_until_ready(inputs_embeds)

    # Also check the recommended zero-cost identity path.
    fast_out, _, _ = module_forward(emb, mask, ttids, attn_mask, materialize_copy=False)
    jax.block_until_ready(fast_out)

    np.testing.assert_allclose(np.asarray(inputs_embeds), np.asarray(ref), rtol=1e-6, atol=1e-6)
    np.testing.assert_allclose(np.asarray(inputs_embeds), np.asarray(emb), rtol=0, atol=0)
    np.testing.assert_allclose(np.asarray(fast_out), np.asarray(emb), rtol=0, atol=0)
    assert token_type_ids.shape == (B, S)
    assert attention_mask.shape == (B, S)

    print("KERNEL_OK")
</pallas_src>

<mosaic_0001>
module attributes {stable_mosaic.version = 11 : i64} {
  func.func @_hbm_copy_kernel(%arg0: memref<2x8x384xf32, #tpu.memory_space<any>>, %arg1: memref<2x8x384xf32, #tpu.memory_space<any>>, %arg2: memref<!tpu.dma_semaphore, #tpu.memory_space<semaphore_mem>>) attributes {dimension_semantics = [], scalar_prefetch = 0 : i64, scratch_operands = 1 : i64, tpu.core_type = #tpu.core_type<tc>} {
    tpu.enqueue_dma source(%arg0 : memref<2x8x384xf32, #tpu.memory_space<any>>) target(%arg1 : memref<2x8x384xf32, #tpu.memory_space<any>>) target_semaphore(%arg2 : memref<!tpu.dma_semaphore, #tpu.memory_space<semaphore_mem>>)
    tpu.wait_dma2 semaphore(%arg2 : memref<!tpu.dma_semaphore, #tpu.memory_space<semaphore_mem>>) src(%arg0 : memref<2x8x384xf32, #tpu.memory_space<any>>) dst(%arg1 : memref<2x8x384xf32, #tpu.memory_space<any>>)
    return
  }
}

</mosaic_0001>

<llo_original>
// kernel: tpu_custom_call.1
$region0: #{tpu_custom_call.1}
  #allocation0 [shape = 'u32[]', space=smem, size = 0x4, offset = 0x4, fixed_abs, tag = 'smem constant byte address 0x4 - core index']
  #allocation1 [shape = 'u32[144,128]{1,0:T(1,128)}', space=vmem, size = 0x12000, scoped, tag = 'internal scratch']
  #allocation2 [shape = 's32[1]{0}', space=sflag, size = 0x4, scoped, tag = 'scratch operand']
  #allocation3 [shape = 's32[]', space=sflag, size = 0x4, offset = 0, fixed_abs, tag = 'sflag constant byte address 0x0 - dummy sync flag']
  #allocation4 [shape = 'u32[0]{0}', space=smem, size = 0, offset = 0, fixed_abs, tag = 'smem constant byte address 0x0 - null']
  %s0 = inlined_call_operand.hbm [shape: f32[2,8,384], index: 0, kind: input, shape index: {}]
  %s1 = inlined_call_operand.hbm [shape: f32[2,8,384], index: 1, kind: output, shape index: {}]
  %s2 = sld [smem:[#allocation0]]
  $region2: #{tpu_custom_call.1} parent=0
    _
  %s4 = ssub.s32 1, %s2
  %s5 = scalar_select 0, %s4, %s2
  %s7 = sshll.u32 1, 14
  %s8 = sxor.u32 4294967295, %s7
  %s11 = sshll.u32 3, 24
  %s12 = sxor.u32 4294967295, %s11
  %s13 = sand.u32 0, %s12
  %s15 = sor.u32 %s13, 0
  %18 = dma.general %s0, 768, %s1, [#allocation2], [#allocation3], [#allocation4], %s15, 0
  %s19 = smul.u32 8, 2
  %s20 = smul.u32 %s19, 1
  %s21 = smul.u32 %s20, 3
  %s22 = sshll.u32 %s21, 4
  %23 = dma.done [#allocation2], %s22
  %24 = vsyncmov [#allocation2]
  %s25 = vpop.sfrf %24
  %p26 = scmp.eq.s32.totalorder %s25, 0
  %p27 = pneg %p26
  %29 = shalt.err (%p27)

</llo_original>
